<compile_context>
chip_gen: v7x
topology: tpu7x:2x2x1
jax: 0.10.0
libtpu: 0.0.40
codegen_flags: <defaults>
</compile_context>

<pallas_src>
import jax
import jax.numpy as jnp
from jax import lax
from jax.experimental import pallas as pl
from jax.experimental.pallas import tpu as pltpu


def _round_up(x: int, m: int) -> int:
    return ((x + m - 1) // m) * m


# -----------------------------------------------------------------------------
# One-time parameter packing (review items: persist bf16 weights, 1-2 slabs).
# -----------------------------------------------------------------------------
def prepare_params(emb_user, emb_item, params, *, dim_mlp):
    """Pack embedding tables + fc weights into one bf16 slab and all biases
    into one f32 slab.  Returns (w_slab, b_slab, static_layout)."""
    num_users = emb_user.shape[0]
    num_items = emb_item.shape[0]
    num_hidden = (len(params) - 2) // 2

    u_k = _round_up(num_users, 8)
    i_k = _round_up(num_items, 8)
    gather_k = u_k + i_k                     # K of the one-hot gather matmul

    w_list = [params[2 * l] for l in range(num_hidden)]        # (out, in)
    b_list = [params[2 * l + 1] for l in range(num_hidden)]    # (out, 1)
    w_out, b_out = params[2 * num_hidden], params[2 * num_hidden + 1]
    last_dim = w_out.shape[1]

    width = _round_up(max([gather_k] + [w.shape[1] for w in w_list] + [1]), 128)

    # ---- row layout of the bf16 weight slab (16-row aligned for bf16 tiles) ----
    emb_rows = 2 * dim_mlp
    emb_off = 0
    row = _round_up(emb_rows, 16)
    w_offs = []
    for w in w_list:
        w_offs.append(row)
        row += _round_up(w.shape[0], 16)
    wout_off = row                           # final projection stored TRANSPOSED
    row += _round_up(last_dim, 16)
    total_rows = row

    w_slab = jnp.zeros((total_rows, width), jnp.float32)
    # block-diagonal transposed embedding table:
    #   rows [0,dim)      x cols [0,num_users)        = Emb_user.T
    #   rows [dim,2*dim)  x cols [u_k,u_k+num_items)  = Emb_item.T
    w_slab = w_slab.at[emb_off:emb_off + dim_mlp, :num_users].set(emb_user.T)
    w_slab = w_slab.at[emb_off + dim_mlp:emb_off + 2 * dim_mlp,
                       u_k:u_k + num_items].set(emb_item.T)
    for off, w in zip(w_offs, w_list):
        w_slab = w_slab.at[off:off + w.shape[0], :w.shape[1]].set(w)
    w_slab = w_slab.at[wout_off:wout_off + last_dim, 0:1].set(w_out.T)
    w_slab = w_slab.astype(jnp.bfloat16)     # cast ONCE, persisted

    # ---- f32 bias slab (8-row aligned), shape (rows, 1) broadcasts on lanes ----
    b_offs = []
    brow = 0
    for b in b_list + [b_out]:
        b_offs.append(brow)
        brow += _round_up(b.shape[0], 8)
    b_slab = jnp.zeros((brow, 1), jnp.float32)
    for off, b in zip(b_offs, b_list + [b_out]):
        b_slab = b_slab.at[off:off + b.shape[0], 0:1].set(b)

    layout = dict(
        num_hidden=num_hidden,
        dim_mlp=dim_mlp,
        u_k=u_k,
        gather_k=gather_k,
        emb_off=emb_off,
        w=tuple((off, w.shape[0], w.shape[1]) for off, w in zip(w_offs, w_list)),
        wout=(wout_off, last_dim),
        b=tuple(b_offs[:num_hidden]),
        b_out=b_offs[num_hidden],
    )
    return w_slab, b_slab, layout


# -----------------------------------------------------------------------------
# Fused kernel: one-hot embedding gather + MLP + sigmoid, batch on lanes.
# -----------------------------------------------------------------------------
def _make_kernel(layout):
    num_hidden = layout["num_hidden"]
    dim_mlp = layout["dim_mlp"]
    u_k = layout["u_k"]
    gather_k = layout["gather_k"]
    emb_off = layout["emb_off"]

    def kernel(u_idx_ref, i_idx_ref, w_ref, b_ref, out_ref):
        tb = out_ref.shape[-1]

        # ---- fused embedding gather (one-hot matmul against block-diag table) ----
        u_idx = u_idx_ref[...]                       # (1, TB) int32
        i_idx = i_idx_ref[...] + u_k                 # shift into item column block
        iota = lax.broadcasted_iota(jnp.int32, (gather_k, tb), 0)
        onehot = jnp.logical_or(iota == u_idx, iota == i_idx).astype(jnp.bfloat16)
        emb_t = w_ref[emb_off:emb_off + 2 * dim_mlp, :gather_k]   # (2*dim, K) bf16
        h = jnp.dot(emb_t, onehot, preferred_element_type=jnp.float32)
        h = h.astype(jnp.bfloat16)                   # (2*dim_mlp, TB) == concat(u, i)

        # ---- hidden Linear + ReLU (bf16 MXU operands, f32 accumulation) ----
        for l in range(num_hidden):
            w_off, out_f, in_f = layout["w"][l]
            b_off = layout["b"][l]
            w = w_ref[w_off:w_off + out_f, :in_f]    # (out, in) bf16
            b = b_ref[b_off:b_off + out_f, :]        # (out, 1)  f32 -> lane broadcast
            z = jnp.dot(w, h, preferred_element_type=jnp.float32) + b
            h = jnp.maximum(z, 0.0)                  # f32
            if l + 1 < num_hidden:
                h = h.astype(jnp.bfloat16)           # only re-pack if MXU follows

        # ---- final (1, last) projection: VPU multiply + sublane reduce ----
        wout_off, last_dim = layout["wout"]
        b_out = b_ref[layout["b_out"]:layout["b_out"] + 1, :]               # (1, 1)
        w_out_t = w_ref[wout_off:wout_off + last_dim, 0:1].astype(jnp.float32)
        logits = jnp.sum(w_out_t * h.astype(jnp.float32), axis=0, keepdims=True) + b_out
        out_ref[...] = jax.nn.sigmoid(logits)        # (1, TB) lane-dense f32 store

    return kernel


def make_forward(layout, *, max_tile=4096, lane_multiple=256):
    """Build the jitted forward(user_indices, item_indices, w_slab, b_slab)."""
    kernel = _make_kernel(layout)

    @jax.jit
    def forward(user_indices, item_indices, w_slab, b_slab):
        B = user_indices.shape[0]
        # Tile: multiple of 256 lanes (ok on v5e too), capped at 4096, and
        # >= 2 grid steps whenever B allows so both v7x TensorCores get work.
        tile = _round_up(pl.cdiv(B, 2), lane_multiple)
        tile = max(lane_multiple, min(tile, max_tile))
        b_pad = _round_up(B, tile)
        grid = (b_pad // tile,)

        def pad_idx(idx):
            idx = idx.astype(jnp.int32)
            if b_pad != B:
                idx = jnp.pad(idx, (0, b_pad - B))   # pad with index 0 (valid row)
            return idx.reshape(1, b_pad)

        u = pad_idx(user_indices)
        it = pad_idx(item_indices)

        out = pl.pallas_call(
            kernel,
            grid=grid,
            in_specs=[
                pl.BlockSpec((1, tile), lambda i: (0, i)),       # user idx (lanes)
                pl.BlockSpec((1, tile), lambda i: (0, i)),       # item idx (lanes)
                pl.BlockSpec(w_slab.shape, lambda i: (0, 0)),    # resident bf16 slab
                pl.BlockSpec(b_slab.shape, lambda i: (0, 0)),    # resident f32 biases
            ],
            out_specs=pl.BlockSpec((1, tile), lambda i: (0, i)),
            out_shape=jax.ShapeDtypeStruct((1, b_pad), jnp.float32),
            compiler_params=pltpu.CompilerParams(
                dimension_semantics=("parallel",)),
        )(u, it, w_slab, b_slab)

        return out[0, :B].reshape(B, 1)

    return forward


# -----------------------------------------------------------------------------
# Init + pure-JAX f32 reference (for correctness check).
# -----------------------------------------------------------------------------
def init_params(key, layers):
    """fc_layers + linear1, matching torch.nn.Linear default init.
    W stored (out, in), b stored (out, 1)."""
    params = []
    sizes = list(zip(layers[:-1], layers[1:])) + [(layers[-1], 1)]
    for (fan_in, fan_out) in sizes:
        key, kw, kb = jax.random.split(key, 3)
        bound = 1.0 / float(fan_in) ** 0.5
        w = jax.random.uniform(kw, (fan_out, fan_in), jnp.float32, -bound, bound)
        b = jax.random.uniform(kb, (fan_out, 1), jnp.float32, -bound, bound)
        params += [w, b]
    return key, params


def reference_forward(user_idx, item_idx, emb_user, emb_item, params):
    h = jnp.concatenate([emb_user[user_idx], emb_item[item_idx]], axis=-1)
    n_hidden = (len(params) - 2) // 2
    for i in range(n_hidden):
        w, b = params[2 * i], params[2 * i + 1]
        h = jnp.maximum(h @ w.T + b[:, 0], 0.0)
    w, b = params[2 * n_hidden], params[2 * n_hidden + 1]
    return jax.nn.sigmoid(h @ w.T + b[:, 0])  # (B, 1)


if __name__ == "__main__":
    config = {
        "num_users": 32,
        "num_items": 40,
        "dim_mlp": 16,
        "layers": [32, 64, 32, 16],   # layers[0] == 2 * dim_mlp
    }
    B = 1000  # not a tile multiple -> exercises padding; 2 grid steps

    key = jax.random.PRNGKey(0)

    # Embedding tables (torch.nn.Embedding default ~ N(0, 1)).
    key, ku, ki = jax.random.split(key, 3)
    emb_user = jax.random.normal(ku, (config["num_users"], config["dim_mlp"]), jnp.float32)
    emb_item = jax.random.normal(ki, (config["num_items"], config["dim_mlp"]), jnp.float32)

    # Linear layer parameters.
    key, params = init_params(key, config["layers"])

    # Input indices.
    key, k1, k2 = jax.random.split(key, 3)
    user_indices = jax.random.randint(k1, (B,), 0, config["num_users"], dtype=jnp.int32)
    item_indices = jax.random.randint(k2, (B,), 0, config["num_items"], dtype=jnp.int32)

    # One-time packing of all parameters (bf16 weight slab + f32 bias slab).
    w_slab, b_slab, layout = prepare_params(
        emb_user, emb_item, params, dim_mlp=config["dim_mlp"])
    forward = make_forward(layout)

    out = forward(user_indices, item_indices, w_slab, b_slab)
    out = jax.block_until_ready(out)

    ref = reference_forward(user_indices, item_indices, emb_user, emb_item, params)
    assert out.shape == (B, 1), out.shape
    assert bool(jnp.all(jnp.isfinite(out)))
    # bf16 MXU operands with f32 accumulation vs pure-f32 reference: loose
    # absolute tolerance on the sigmoid outputs (values in [0, 1]).
    assert jnp.allclose(out, ref, atol=2e-2, rtol=0.0), float(jnp.max(jnp.abs(out - ref)))

    print("KERNEL_OK")
</pallas_src>

<mosaic_0001>
module attributes {stable_mosaic.version = 11 : i64} {
  func.func @kernel(%arg0: i32, %arg1: memref<1x512xi32, #tpu.memory_space<vmem>>, %arg2: memref<1x512xi32, #tpu.memory_space<vmem>>, %arg3: memref<160x128xbf16, #tpu.memory_space<vmem>>, %arg4: memref<120x1xf32, #tpu.memory_space<vmem>>, %arg5: memref<1x512xf32, #tpu.memory_space<vmem>>) attributes {dimension_semantics = [#tpu.dimension_semantics<parallel>], iteration_bounds = array<i64: 2>, scalar_prefetch = 0 : i64, scratch_operands = 0 : i64, tpu.core_type = #tpu.core_type<tc>, window_params = [{transform_indices = @transform_0, window_bounds = array<i64: 1, 512>}, {transform_indices = @transform_1, window_bounds = array<i64: 1, 512>}, {pipeline_mode = #tpu.pipeline_mode<synchronous>, transform_indices = @transform_2, window_bounds = array<i64: 160, 128>}, {pipeline_mode = #tpu.pipeline_mode<synchronous>, transform_indices = @transform_3, window_bounds = array<i64: 120, 1>}, {transform_indices = @transform_4, window_bounds = array<i64: 1, 512>}]} {
    %c0 = arith.constant 0 : index
    %c0_0 = arith.constant 0 : index
    %0 = vector.load %arg1[%c0, %c0_0] : memref<1x512xi32, #tpu.memory_space<vmem>>, vector<1x512xi32>
    %c0_1 = arith.constant 0 : index
    %c0_2 = arith.constant 0 : index
    %1 = vector.load %arg2[%c0_1, %c0_2] : memref<1x512xi32, #tpu.memory_space<vmem>>, vector<1x512xi32>
    %c32_i32 = arith.constant 32 : i32
    %2 = vector.broadcast %c32_i32 : i32 to vector<1x512xi32>
    %3 = arith.addi %1, %2 : vector<1x512xi32>
    %4 = tpu.iota {dimensions = array<i32: 0>} : vector<72x512xi32>
    %5 = vector.broadcast %0 : vector<1x512xi32> to vector<72x512xi32>
    %6 = arith.cmpi eq, %4, %5 : vector<72x512xi32>
    %7 = vector.broadcast %3 : vector<1x512xi32> to vector<72x512xi32>
    %8 = arith.cmpi eq, %4, %7 : vector<72x512xi32>
    %9 = arith.ori %6, %8 : vector<72x512xi1>
    %10 = arith.extui %9 : vector<72x512xi1> to vector<72x512xi32>
    %11 = arith.sitofp %10 : vector<72x512xi32> to vector<72x512xf32>
    %12 = arith.truncf %11 : vector<72x512xf32> to vector<72x512xbf16>
    %c0_3 = arith.constant 0 : index
    %c0_4 = arith.constant 0 : index
    %13 = vector.load %arg3[%c0_3, %c0_4] : memref<160x128xbf16, #tpu.memory_space<vmem>>, vector<32x72xbf16>
    %cst = arith.constant dense<0.000000e+00> : vector<32x512xf32>
    %14 = tpu.matmul %13, %12, %cst {dimension_numbers = #tpu.dot_dimension_numbers<[1], [0], [0], [1], [0, 0, 1, 1], [], []>} : vector<32x72xbf16>, vector<72x512xbf16>, vector<32x512xf32> -> vector<32x512xf32>
    %15 = arith.truncf %14 : vector<32x512xf32> to vector<32x512xbf16>
    %c32 = arith.constant 32 : index
    %c0_5 = arith.constant 0 : index
    %16 = vector.load %arg3[%c32, %c0_5] : memref<160x128xbf16, #tpu.memory_space<vmem>>, vector<64x32xbf16>
    %c0_6 = arith.constant 0 : index
    %c0_7 = arith.constant 0 : index
    %17 = vector.load %arg4[%c0_6, %c0_7] : memref<120x1xf32, #tpu.memory_space<vmem>>, vector<64x1xf32>
    %cst_8 = arith.constant dense<0.000000e+00> : vector<64x512xf32>
    %18 = tpu.matmul %16, %15, %cst_8 {dimension_numbers = #tpu.dot_dimension_numbers<[1], [0], [0], [1], [0, 0, 1, 1], [], []>} : vector<64x32xbf16>, vector<32x512xbf16>, vector<64x512xf32> -> vector<64x512xf32>
    %19 = vector.broadcast %17 : vector<64x1xf32> to vector<64x512xf32>
    %20 = arith.addf %18, %19 : vector<64x512xf32>
    %cst_9 = arith.constant 0.000000e+00 : f32
    %21 = vector.broadcast %cst_9 : f32 to vector<64x512xf32>
    %22 = arith.maximumf %20, %21 : vector<64x512xf32>
    %23 = arith.truncf %22 : vector<64x512xf32> to vector<64x512xbf16>
    %c96 = arith.constant 96 : index
    %c0_10 = arith.constant 0 : index
    %24 = vector.load %arg3[%c96, %c0_10] : memref<160x128xbf16, #tpu.memory_space<vmem>>, vector<32x64xbf16>
    %c64 = arith.constant 64 : index
    %c0_11 = arith.constant 0 : index
    %25 = vector.load %arg4[%c64, %c0_11] : memref<120x1xf32, #tpu.memory_space<vmem>>, vector<32x1xf32>
    %cst_12 = arith.constant dense<0.000000e+00> : vector<32x512xf32>
    %26 = tpu.matmul %24, %23, %cst_12 {dimension_numbers = #tpu.dot_dimension_numbers<[1], [0], [0], [1], [0, 0, 1, 1], [], []>} : vector<32x64xbf16>, vector<64x512xbf16>, vector<32x512xf32> -> vector<32x512xf32>
    %27 = vector.broadcast %25 : vector<32x1xf32> to vector<32x512xf32>
    %28 = arith.addf %26, %27 : vector<32x512xf32>
    %cst_13 = arith.constant 0.000000e+00 : f32
    %29 = vector.broadcast %cst_13 : f32 to vector<32x512xf32>
    %30 = arith.maximumf %28, %29 : vector<32x512xf32>
    %31 = arith.truncf %30 : vector<32x512xf32> to vector<32x512xbf16>
    %c128 = arith.constant 128 : index
    %c0_14 = arith.constant 0 : index
    %32 = vector.load %arg3[%c128, %c0_14] : memref<160x128xbf16, #tpu.memory_space<vmem>>, vector<16x32xbf16>
    %c96_15 = arith.constant 96 : index
    %c0_16 = arith.constant 0 : index
    %33 = vector.load %arg4[%c96_15, %c0_16] : memref<120x1xf32, #tpu.memory_space<vmem>>, vector<16x1xf32>
    %cst_17 = arith.constant dense<0.000000e+00> : vector<16x512xf32>
    %34 = tpu.matmul %32, %31, %cst_17 {dimension_numbers = #tpu.dot_dimension_numbers<[1], [0], [0], [1], [0, 0, 1, 1], [], []>} : vector<16x32xbf16>, vector<32x512xbf16>, vector<16x512xf32> -> vector<16x512xf32>
    %35 = vector.broadcast %33 : vector<16x1xf32> to vector<16x512xf32>
    %36 = arith.addf %34, %35 : vector<16x512xf32>
    %cst_18 = arith.constant 0.000000e+00 : f32
    %37 = vector.broadcast %cst_18 : f32 to vector<16x512xf32>
    %38 = arith.maximumf %36, %37 : vector<16x512xf32>
    %c112 = arith.constant 112 : index
    %c0_19 = arith.constant 0 : index
    %39 = vector.load %arg4[%c112, %c0_19] : memref<120x1xf32, #tpu.memory_space<vmem>>, vector<1x1xf32>
    %c144 = arith.constant 144 : index
    %c0_20 = arith.constant 0 : index
    %40 = vector.load %arg3[%c144, %c0_20] : memref<160x128xbf16, #tpu.memory_space<vmem>>, vector<16x1xbf16>
    %41 = arith.extf %40 : vector<16x1xbf16> to vector<16x1xf32>
    %42 = vector.broadcast %41 : vector<16x1xf32> to vector<16x512xf32>
    %43 = arith.mulf %42, %38 : vector<16x512xf32>
    %cst_21 = arith.constant dense<0.000000e+00> : vector<512xf32>
    %44 = vector.multi_reduction <add>, %43, %cst_21 [0] : vector<16x512xf32> to vector<512xf32>
    %45 = vector.shape_cast %44 : vector<512xf32> to vector<1x512xf32>
    %46 = vector.broadcast %39 : vector<1x1xf32> to vector<1x512xf32>
    %47 = arith.addf %45, %46 : vector<1x512xf32>
    %48 = arith.negf %47 : vector<1x512xf32>
    %49 = math.exp %48 : vector<1x512xf32>
    %cst_22 = arith.constant 1.000000e+00 : f32
    %50 = vector.broadcast %cst_22 : f32 to vector<1x512xf32>
    %51 = arith.addf %50, %49 : vector<1x512xf32>
    %52 = arith.divf %50, %51 : vector<1x512xf32>
    %c0_23 = arith.constant 0 : index
    %c0_24 = arith.constant 0 : index
    %53 = vector.load %arg5[%c0_23, %c0_24] : memref<1x512xf32, #tpu.memory_space<vmem>>, vector<1x512xf32>
    tpu.vector_store %arg5[%c0_23, %c0_24], %52 {strides = array<i32>} : memref<1x512xf32, #tpu.memory_space<vmem>>, vector<1x512xf32>,
    return
  }
  func.func @transform_0(%arg0: i32) -> (i32, i32) {
    %c0_i32 = arith.constant 0 : i32
    %c0_i32_0 = arith.constant 0 : i32
    return %c0_i32, %arg0 : i32, i32
  }
  func.func @transform_1(%arg0: i32) -> (i32, i32) {
    %c0_i32 = arith.constant 0 : i32
    %c0_i32_0 = arith.constant 0 : i32
    return %c0_i32, %arg0 : i32, i32
  }
  func.func @transform_2(%arg0: i32) -> (i32, i32) {
    %c0_i32 = arith.constant 0 : i32
    %c0_i32_0 = arith.constant 0 : i32
    %c0_i32_1 = arith.constant 0 : i32
    return %c0_i32, %c0_i32_0 : i32, i32
  }
  func.func @transform_3(%arg0: i32) -> (i32, i32) {
    %c0_i32 = arith.constant 0 : i32
    %c0_i32_0 = arith.constant 0 : i32
    %c0_i32_1 = arith.constant 0 : i32
    return %c0_i32, %c0_i32_0 : i32, i32
  }
  func.func @transform_4(%arg0: i32) -> (i32, i32) {
    %c0_i32 = arith.constant 0 : i32
    %c0_i32_0 = arith.constant 0 : i32
    return %c0_i32, %arg0 : i32, i32
  }
}

</mosaic_0001>

<llo_original>
// kernel: forward.1
$region0: #{forward.1}
  #allocation0 [shape = 'u32[]', space=smem, size = 0x4, offset = 0x4, fixed_abs, tag = 'smem constant byte address 0x4 - core index']
  #allocation1 [shape = 'u32[144,128]{1,0:T(1,128)}', space=vmem, size = 0x12000, scoped, tag = 'internal scratch']
  %s0 = inlined_call_operand.vmem [shape: s32[1,1024], index: 0, kind: input, shape index: {}]
  %s1 = inlined_call_operand.vmem [shape: s32[1,1024], index: 1, kind: input, shape index: {}]
  %s2 = inlined_call_operand.vmem [shape: bf16[160,128], index: 2, kind: input, shape index: {}]
  %s3 = inlined_call_operand.vmem [shape: f32[120,1], index: 3, kind: input, shape index: {}]
  %s4 = inlined_call_operand.vmem [shape: f32[1,1024], index: 4, kind: output, shape index: {}]
  %s5 = sld [smem:[#allocation0]]
  $region49: #{forward.1} parent=0
    _
  %s7 = ssub.s32 1, %s5
  %s8 = scalar_select 0, %s7, %s5
  loop: start=0, step=1, limit=4
  $region2: #{forward.1} parent=0 // loop_pre_header
    _
  $region3: #{forward.1} parent=0 // loop_header
    %s10 = sphi 0, %s14
    %p11 = scmp.ge.s32.totalorder %s10, 4
    %s20 = sphi 0, %s22
    %s23 = sphi 0, %s20
    %s24 = sphi 0, %s23
    %s40 = sphi 0, %s24
    %s46 = sphi 0, %s48
    %s49 = sphi 0, %s46
    %s50 = sphi 0, %s49
    %s66 = sphi 0, %s50
    %s70 = sphi 0, %s70
    %s72 = sphi 0, %s70
    %s73 = sphi 0, %s72
    %s87 = sphi 0, %s73
    %s91 = sphi 0, %s91
    %s93 = sphi 0, %s91
    %s94 = sphi 0, %s93
    %s108 = sphi 0, %s94
    %s114 = sphi 0, %s116
    %s117 = sphi 0, %s114
    %s118 = sphi 0, %s117
    %s134 = sphi 0, %s118
  $region4: #{forward.1} parent=0 // loop_header_branch
    %13 = sbr.rel (%p11) target = $region8
  $region5: #{forward.1} parent=0 // loop_body
    %s15 = ssub.s32 %s10, 1
    %s16 = ssub.s32 %s10, 2
    %s17 = sadd.s32 %s10, 1
    %s18 = ssub.s32 %s10, %s17
    %p19 = scmp.eq.s32.totalorder %s18, 0
    %s21 = sadd.s32 %s20, 1
    %s22 = scalar_select %p19, %s20, %s21
    %p25 = pneg %p19
    %p26 = scmp.eq.s32.totalorder %s10, 1
    %p27 = por %p25, %p26
    %p28 = scmp.ne.s32.totalorder %s20, %s23
    %p29 = scmp.eq.s32.totalorder %s10, 0
    %p30 = por %p28, %p29
    %p31 = scmp.ne.s32.totalorder %s20, %s23
    %p32 = scmp.eq.s32.totalorder %s15, 1
    %p33 = por %p31, %p32
    %p34 = scmp.ne.s32.totalorder %s23, %s24
    %p35 = scmp.eq.s32.totalorder %s15, 0
    %p36 = por %p34, %p35
    %p37 = scmp.ne.s32.totalorder %s23, %s24
    %p38 = scmp.eq.s32.totalorder %s16, 1
    %p39 = por %p37, %p38
    %p41 = scmp.ne.s32.totalorder %s24, %s40
    %p42 = scmp.eq.s32.totalorder %s16, 0
    %p43 = por %p41, %p42
    %s44 = ssub.s32 %s10, %s17
    %p45 = scmp.eq.s32.totalorder %s44, 0
    %s47 = sadd.s32 %s46, 1
    %s48 = scalar_select %p45, %s46, %s47
    %p51 = pneg %p45
    %p52 = scmp.eq.s32.totalorder %s10, 1
    %p53 = por %p51, %p52
    %p54 = scmp.ne.s32.totalorder %s46, %s49
    %p55 = scmp.eq.s32.totalorder %s10, 0
    %p56 = por %p54, %p55
    %p57 = scmp.ne.s32.totalorder %s46, %s49
    %p58 = scmp.eq.s32.totalorder %s15, 1
    %p59 = por %p57, %p58
    %p60 = scmp.ne.s32.totalorder %s49, %s50
    %p61 = scmp.eq.s32.totalorder %s15, 0
    %p62 = por %p60, %p61
    %p63 = scmp.ne.s32.totalorder %s49, %s50
    %p64 = scmp.eq.s32.totalorder %s16, 1
    %p65 = por %p63, %p64
    %p67 = scmp.ne.s32.totalorder %s50, %s66
    %p68 = scmp.eq.s32.totalorder %s16, 0
    %p69 = por %p67, %p68
    %s71 = sadd.s32 %s70, 1
    %p74 = scmp.eq.s32.totalorder %s10, 1
    %p75 = scmp.ne.s32.totalorder %s70, %s72
    %p76 = scmp.eq.s32.totalorder %s10, 0
    %p77 = por %p75, %p76
    %p78 = scmp.ne.s32.totalorder %s70, %s72
    %p79 = scmp.eq.s32.totalorder %s15, 1
    %p80 = por %p78, %p79
    %p81 = scmp.ne.s32.totalorder %s72, %s73
    %p82 = scmp.eq.s32.totalorder %s15, 0
    %p83 = por %p81, %p82
    %p84 = scmp.ne.s32.totalorder %s72, %s73
    %p85 = scmp.eq.s32.totalorder %s16, 1
    %p86 = por %p84, %p85
    %p88 = scmp.ne.s32.totalorder %s73, %s87
    %p89 = scmp.eq.s32.totalorder %s16, 0
    %p90 = por %p88, %p89
    %s92 = sadd.s32 %s91, 1
    %p95 = scmp.eq.s32.totalorder %s10, 1
    %p96 = scmp.ne.s32.totalorder %s91, %s93
    %p97 = scmp.eq.s32.totalorder %s10, 0
    %p98 = por %p96, %p97
    %p99 = scmp.ne.s32.totalorder %s91, %s93
    %p100 = scmp.eq.s32.totalorder %s15, 1
    %p101 = por %p99, %p100
    %p102 = scmp.ne.s32.totalorder %s93, %s94
    %p103 = scmp.eq.s32.totalorder %s15, 0
    %p104 = por %p102, %p103
    %p105 = scmp.ne.s32.totalorder %s93, %s94
    %p106 = scmp.eq.s32.totalorder %s16, 1
    %p107 = por %p105, %p106
    %p109 = scmp.ne.s32.totalorder %s94, %s108
    %p110 = scmp.eq.s32.totalorder %s16, 0
    %p111 = por %p109, %p110
    %s112 = ssub.s32 %s10, %s17
    %p113 = scmp.eq.s32.totalorder %s112, 0
    %s115 = sadd.s32 %s114, 1
    %s116 = scalar_select %p113, %s114, %s115
    %p119 = pneg %p113
    %p120 = scmp.eq.s32.totalorder %s10, 1
    %p121 = por %p119, %p120
    %p122 = scmp.ne.s32.totalorder %s114, %s117
    %p123 = scmp.eq.s32.totalorder %s10, 0
    %p124 = por %p122, %p123
    %p125 = scmp.ne.s32.totalorder %s114, %s117
    %p126 = scmp.eq.s32.totalorder %s15, 1
    %p127 = por %p125, %p126
    %p128 = scmp.ne.s32.totalorder %s117, %s118
    %p129 = scmp.eq.s32.totalorder %s15, 0
    %p130 = por %p128, %p129
    %p131 = scmp.ne.s32.totalorder %s117, %s118
    %p132 = scmp.eq.s32.totalorder %s16, 1
    %p133 = por %p131, %p132
    %p135 = scmp.ne.s32.totalorder %s118, %s134
    %p136 = scmp.eq.s32.totalorder %s16, 0
    %p137 = por %p135, %p136
    %p138 = scmp.le.s32.totalorder 1, %s10
    %p139 = scmp.lt.s32.totalorder %s10, 3
    %p140 = pnand %p138, %p139
    %p141 = pneg %p140
    // Predicated region
    $region9: #{forward.1} parent=5 // pred_check
      _
    $region10: #{forward.1} parent=5 // pred_check_branch
      %143 = sbr.rel (%p140) target = $region12
    $region11: #{forward.1} parent=5 // pred_region
      %s144 = ssub.s32 %s10, 1
      // Predicated region
      $region13: #{forward.1} parent=11 // pred_check
        %p145 = pneg %p83
      $region14: #{forward.1} parent=11 // pred_check_branch
        %147 = sbr.rel (%p145) target = $region16
      $region15: #{forward.1} parent=11 // pred_region
        _
      $region16: #{forward.1} parent=11 // pred_fallthru
        _
      // Predicated region
      $region17: #{forward.1} parent=11 // pred_check
        %p148 = pneg %p104
      $region18: #{forward.1} parent=11 // pred_check_branch
        %150 = sbr.rel (%p148) target = $region20
      $region19: #{forward.1} parent=11 // pred_region
        _
      $region20: #{forward.1} parent=11 // pred_fallthru
        _
    $region12: #{forward.1} parent=5 // pred_fallthru
      _
    %p151 = scmp.lt.s32.totalorder %s10, 2
    // Predicated region
    $region21: #{forward.1} parent=5 // pred_check
      %p152 = pneg %p151
    $region22: #{forward.1} parent=5 // pred_check_branch
      %154 = sbr.rel (%p152) target = $region24
    $region23: #{forward.1} parent=5 // pred_region
      // Predicated region
      $region25: #{forward.1} parent=23 // pred_check
        %p155 = pneg %p30
      $region26: #{forward.1} parent=23 // pred_check_branch
        %157 = sbr.rel (%p155) target = $region28
      $region27: #{forward.1} parent=23 // pred_region
        %s158 = smul.u32 4, %s10
        %p159 = scmp.lt.s32.totalorder %s158, 7
        %s160 = scalar_select %p159, %s158, 7
        %s161 = scalar_lea.vmem %s0, %s160
        %s162 = smul.u32 4, %s10
      $region28: #{forward.1} parent=23 // pred_fallthru
        _
      // Predicated region
      $region29: #{forward.1} parent=23 // pred_check
        %p163 = pneg %p56
      $region30: #{forward.1} parent=23 // pred_check_branch
        %165 = sbr.rel (%p163) target = $region32
      $region31: #{forward.1} parent=23 // pred_region
        %s166 = smul.u32 4, %s10
        %p167 = scmp.lt.s32.totalorder %s166, 7
        %s168 = scalar_select %p167, %s166, 7
        %s169 = scalar_lea.vmem %s1, %s168
        %s170 = smul.u32 4, %s10
      $region32: #{forward.1} parent=23 // pred_fallthru
        _
    $region24: #{forward.1} parent=5 // pred_fallthru
      _
    %p171 = scmp.le.s32.totalorder 1, %s10
    %p172 = scmp.lt.s32.totalorder %s10, 3
    %p173 = pnand %p171, %p172
    %p174 = pneg %p173
    // Predicated region
    $region33: #{forward.1} parent=5 // pred_check
      _
    $region34: #{forward.1} parent=5 // pred_check_branch
      %176 = sbr.rel (%p173) target = $region36
    $region35: #{forward.1} parent=5 // pred_region
      %s177 = ssub.s32 %s10, 1
      %s178 = smul.u32 4, %s15
      %p179 = scmp.lt.s32.totalorder %s178, 7
      %s180 = scalar_select %p179, %s178, 7
      %s181 = scalar_lea.vmem %s0, %s180
      %p182 = pneg %p36
      %p183 = pneg %p33
      %s184 = smul.u32 4, %s15
      %p185 = scmp.lt.s32.totalorder %s184, 7
      %s186 = scalar_select %p185, %s184, 7
      %s187 = scalar_lea.vmem %s1, %s186
      %p188 = pneg %p62
      %p189 = pneg %p59
      %p190 = pneg %p83
      %p191 = pneg %p80
      %p192 = pneg %p104
      %p193 = pneg %p101
      %p194 = pneg %p130
      %p195 = pneg %p127
      %s196 = smul.u32 4, %s15
      %p197 = scmp.lt.s32.totalorder %s196, 7
      %s198 = scalar_select %p197, %s196, 7
      %s199 = scalar_lea.vmem %s4, %s198
      %s200 = smul.u32 4, %s15
      %p201 = scmp.lt.s32.totalorder %s200, 7
      %s202 = scalar_select %p201, %s200, 7
      %s203 = scalar_lea.vmem %s0, %s202
      %s204 = smul.u32 4, %s15
      %s205 = smul.u32 4, %s15
      %p206 = scmp.lt.s32.totalorder %s205, 7
      %s207 = scalar_select %p206, %s205, 7
      %s208 = scalar_lea.vmem %s1, %s207
      %s209 = smul.u32 4, %s15
      %s210 = smul.u32 4, %s15
      %p211 = scmp.lt.s32.totalorder %s210, 7
      %s212 = scalar_select %p211, %s210, 7
      %s213 = scalar_lea.vmem %s4, %s212
      %s214 = smul.u32 4, %s15
      %v216 = vld [vmem:[%s203] sm:$0xf]
      %v217 = vld [vmem:[%s208] sm:$0xf]
      %v218 = vadd.s32 %v217, 32
      %v219 = vlaneseq
      %v220 = vshrl.u32 %v219, 7
      %v221 = vadd.s32 %v220, 8
      %v222 = vadd.s32 %v220, 16
      %v223 = vadd.s32 %v220, 24
      %v224 = vadd.s32 %v220, 32
      %v225 = vadd.s32 %v220, 40
      %v226 = vadd.s32 %v220, 48
      %v227 = vadd.s32 %v220, 56
      %v228 = vadd.s32 %v220, 64
      %v229 = vlaneseq
      %v230 = vshrl.u32 %v229, 7
      %v231 = vsub.s32 0, %v230
      %v232 = vrot.slane %v216, %v231
      %v233 = vlaneseq
      %v234 = vshrl.u32 %v233, 7
      %v235 = vsub.s32 1, %v234
      %v236 = vrot.slane %v216, %v235
      %v237 = vlaneseq
      %v238 = vshrl.u32 %v237, 7
      %v239 = vsub.s32 2, %v238
      %v240 = vrot.slane %v216, %v239
      %v241 = vlaneseq
      %v242 = vshrl.u32 %v241, 7
      %v243 = vsub.s32 3, %v242
      %v244 = vrot.slane %v216, %v243
      %vm245 = vcmp.eq.s32.totalorder %v220, %v232
      %vm246 = vcmp.eq.s32.totalorder %v220, %v236
      %vm247 = vcmp.eq.s32.totalorder %v220, %v240
      %vm248 = vcmp.eq.s32.totalorder %v220, %v244
      %vm249 = vcmp.eq.s32.totalorder %v221, %v232
      %vm250 = vcmp.eq.s32.totalorder %v221, %v236
      %vm251 = vcmp.eq.s32.totalorder %v221, %v240
      %vm252 = vcmp.eq.s32.totalorder %v221, %v244
      %vm253 = vcmp.eq.s32.totalorder %v222, %v232
      %vm254 = vcmp.eq.s32.totalorder %v222, %v236
      %vm255 = vcmp.eq.s32.totalorder %v222, %v240
      %vm256 = vcmp.eq.s32.totalorder %v222, %v244
      %vm257 = vcmp.eq.s32.totalorder %v223, %v232
      %vm258 = vcmp.eq.s32.totalorder %v223, %v236
      %vm259 = vcmp.eq.s32.totalorder %v223, %v240
      %vm260 = vcmp.eq.s32.totalorder %v223, %v244
      %vm261 = vcmp.eq.s32.totalorder %v224, %v232
      %vm262 = vcmp.eq.s32.totalorder %v224, %v236
      %vm263 = vcmp.eq.s32.totalorder %v224, %v240
      %vm264 = vcmp.eq.s32.totalorder %v224, %v244
      %vm265 = vcmp.eq.s32.totalorder %v225, %v232
      %vm266 = vcmp.eq.s32.totalorder %v225, %v236
      %vm267 = vcmp.eq.s32.totalorder %v225, %v240
      %vm268 = vcmp.eq.s32.totalorder %v225, %v244
      %vm269 = vcmp.eq.s32.totalorder %v226, %v232
      %vm270 = vcmp.eq.s32.totalorder %v226, %v236
      %vm271 = vcmp.eq.s32.totalorder %v226, %v240
      %vm272 = vcmp.eq.s32.totalorder %v226, %v244
      %vm273 = vcmp.eq.s32.totalorder %v227, %v232
      %vm274 = vcmp.eq.s32.totalorder %v227, %v236
      %vm275 = vcmp.eq.s32.totalorder %v227, %v240
      %vm276 = vcmp.eq.s32.totalorder %v227, %v244
      %vm277 = vcmp.eq.s32.totalorder %v228, %v232
      %vm278 = vcmp.eq.s32.totalorder %v228, %v236
      %vm279 = vcmp.eq.s32.totalorder %v228, %v240
      %vm280 = vcmp.eq.s32.totalorder %v228, %v244
      %v281 = vlaneseq
      %v282 = vshrl.u32 %v281, 7
      %v283 = vsub.s32 0, %v282
      %v284 = vrot.slane %v218, %v283
      %v285 = vlaneseq
      %v286 = vshrl.u32 %v285, 7
      %v287 = vsub.s32 1, %v286
      %v288 = vrot.slane %v218, %v287
      %v289 = vlaneseq
      %v290 = vshrl.u32 %v289, 7
      %v291 = vsub.s32 2, %v290
      %v292 = vrot.slane %v218, %v291
      %v293 = vlaneseq
      %v294 = vshrl.u32 %v293, 7
      %v295 = vsub.s32 3, %v294
      %v296 = vrot.slane %v218, %v295
      %vm297 = vcmp.eq.s32.totalorder %v220, %v284
      %vm298 = vcmp.eq.s32.totalorder %v220, %v288
      %vm299 = vcmp.eq.s32.totalorder %v220, %v292
      %vm300 = vcmp.eq.s32.totalorder %v220, %v296
      %vm301 = vcmp.eq.s32.totalorder %v221, %v284
      %vm302 = vcmp.eq.s32.totalorder %v221, %v288
      %vm303 = vcmp.eq.s32.totalorder %v221, %v292
      %vm304 = vcmp.eq.s32.totalorder %v221, %v296
      %vm305 = vcmp.eq.s32.totalorder %v222, %v284
      %vm306 = vcmp.eq.s32.totalorder %v222, %v288
      %vm307 = vcmp.eq.s32.totalorder %v222, %v292
      %vm308 = vcmp.eq.s32.totalorder %v222, %v296
      %vm309 = vcmp.eq.s32.totalorder %v223, %v284
      %vm310 = vcmp.eq.s32.totalorder %v223, %v288
      %vm311 = vcmp.eq.s32.totalorder %v223, %v292
      %vm312 = vcmp.eq.s32.totalorder %v223, %v296
      %vm313 = vcmp.eq.s32.totalorder %v224, %v284
      %vm314 = vcmp.eq.s32.totalorder %v224, %v288
      %vm315 = vcmp.eq.s32.totalorder %v224, %v292
      %vm316 = vcmp.eq.s32.totalorder %v224, %v296
      %vm317 = vcmp.eq.s32.totalorder %v225, %v284
      %vm318 = vcmp.eq.s32.totalorder %v225, %v288
      %vm319 = vcmp.eq.s32.totalorder %v225, %v292
      %vm320 = vcmp.eq.s32.totalorder %v225, %v296
      %vm321 = vcmp.eq.s32.totalorder %v226, %v284
      %vm322 = vcmp.eq.s32.totalorder %v226, %v288
      %vm323 = vcmp.eq.s32.totalorder %v226, %v292
      %vm324 = vcmp.eq.s32.totalorder %v226, %v296
      %vm325 = vcmp.eq.s32.totalorder %v227, %v284
      %vm326 = vcmp.eq.s32.totalorder %v227, %v288
      %vm327 = vcmp.eq.s32.totalorder %v227, %v292
      %vm328 = vcmp.eq.s32.totalorder %v227, %v296
      %vm329 = vcmp.eq.s32.totalorder %v228, %v284
      %vm330 = vcmp.eq.s32.totalorder %v228, %v288
      %vm331 = vcmp.eq.s32.totalorder %v228, %v292
      %vm332 = vcmp.eq.s32.totalorder %v228, %v296
      %vm333 = vmor %vm245, %vm297
      %vm334 = vmor %vm246, %vm298
      %vm335 = vmor %vm247, %vm299
      %vm336 = vmor %vm248, %vm300
      %vm337 = vmor %vm249, %vm301
      %vm338 = vmor %vm250, %vm302
      %vm339 = vmor %vm251, %vm303
      %vm340 = vmor %vm252, %vm304
      %vm341 = vmor %vm253, %vm305
      %vm342 = vmor %vm254, %vm306
      %vm343 = vmor %vm255, %vm307
      %vm344 = vmor %vm256, %vm308
      %vm345 = vmor %vm257, %vm309
      %vm346 = vmor %vm258, %vm310
      %vm347 = vmor %vm259, %vm311
      %vm348 = vmor %vm260, %vm312
      %vm349 = vmor %vm261, %vm313
      %vm350 = vmor %vm262, %vm314
      %vm351 = vmor %vm263, %vm315
      %vm352 = vmor %vm264, %vm316
      %vm353 = vmor %vm265, %vm317
      %vm354 = vmor %vm266, %vm318
      %vm355 = vmor %vm267, %vm319
      %vm356 = vmor %vm268, %vm320
      %vm357 = vmor %vm269, %vm321
      %vm358 = vmor %vm270, %vm322
      %vm359 = vmor %vm271, %vm323
      %vm360 = vmor %vm272, %vm324
      %vm361 = vmor %vm273, %vm325
      %vm362 = vmor %vm274, %vm326
      %vm363 = vmor %vm275, %vm327
      %vm364 = vmor %vm276, %vm328
      %vm365 = vmor %vm277, %vm329
      %vm366 = vmor %vm278, %vm330
      %vm367 = vmor %vm279, %vm331
      %vm368 = vmor %vm280, %vm332
      %v369 = vsel %vm333, 1, 0
      %v370 = vsel %vm334, 1, 0
      %v371 = vsel %vm335, 1, 0
      %v372 = vsel %vm336, 1, 0
      %v373 = vsel %vm337, 1, 0
      %v374 = vsel %vm338, 1, 0
      %v375 = vsel %vm339, 1, 0
      %v376 = vsel %vm340, 1, 0
      %v377 = vsel %vm341, 1, 0
      %v378 = vsel %vm342, 1, 0
      %v379 = vsel %vm343, 1, 0
      %v380 = vsel %vm344, 1, 0
      %v381 = vsel %vm345, 1, 0
      %v382 = vsel %vm346, 1, 0
      %v383 = vsel %vm347, 1, 0
      %v384 = vsel %vm348, 1, 0
      %v385 = vsel %vm349, 1, 0
      %v386 = vsel %vm350, 1, 0
      %v387 = vsel %vm351, 1, 0
      %v388 = vsel %vm352, 1, 0
      %v389 = vsel %vm353, 1, 0
      %v390 = vsel %vm354, 1, 0
      %v391 = vsel %vm355, 1, 0
      %v392 = vsel %vm356, 1, 0
      %v393 = vsel %vm357, 1, 0
      %v394 = vsel %vm358, 1, 0
      %v395 = vsel %vm359, 1, 0
      %v396 = vsel %vm360, 1, 0
      %v397 = vsel %vm361, 1, 0
      %v398 = vsel %vm362, 1, 0
      %v399 = vsel %vm363, 1, 0
      %v400 = vsel %vm364, 1, 0
      %v401 = vsel %vm365, 1, 0
      %v402 = vsel %vm366, 1, 0
      %v403 = vsel %vm367, 1, 0
      %v404 = vsel %vm368, 1, 0
      %v405 = vcvt.s32.f32 %v369
      %v406 = vcvt.s32.f32 %v370
      %v407 = vcvt.s32.f32 %v371
      %v408 = vcvt.s32.f32 %v372
      %v409 = vcvt.s32.f32 %v373
      %v410 = vcvt.s32.f32 %v374
      %v411 = vcvt.s32.f32 %v375
      %v412 = vcvt.s32.f32 %v376
      %v413 = vcvt.s32.f32 %v377
      %v414 = vcvt.s32.f32 %v378
      %v415 = vcvt.s32.f32 %v379
      %v416 = vcvt.s32.f32 %v380
      %v417 = vcvt.s32.f32 %v381
      %v418 = vcvt.s32.f32 %v382
      %v419 = vcvt.s32.f32 %v383
      %v420 = vcvt.s32.f32 %v384
      %v421 = vcvt.s32.f32 %v385
      %v422 = vcvt.s32.f32 %v386
      %v423 = vcvt.s32.f32 %v387
      %v424 = vcvt.s32.f32 %v388
      %v425 = vcvt.s32.f32 %v389
      %v426 = vcvt.s32.f32 %v390
      %v427 = vcvt.s32.f32 %v391
      %v428 = vcvt.s32.f32 %v392
      %v429 = vcvt.s32.f32 %v393
      %v430 = vcvt.s32.f32 %v394
      %v431 = vcvt.s32.f32 %v395
      %v432 = vcvt.s32.f32 %v396
      %v433 = vcvt.s32.f32 %v397
      %v434 = vcvt.s32.f32 %v398
      %v435 = vcvt.s32.f32 %v399
      %v436 = vcvt.s32.f32 %v400
      %v437 = vcvt.s32.f32 %v401
      %v438 = vcvt.s32.f32 %v402
      %v439 = vcvt.s32.f32 %v403
      %v440 = vcvt.s32.f32 %v404
      %v441 = vpack.c.bf16 %v409, %v405
      %v442 = vpack.c.bf16 %v410, %v406
      %v443 = vpack.c.bf16 %v411, %v407
      %v444 = vpack.c.bf16 %v412, %v408
      %v445 = vpack.c.bf16 %v417, %v413
      %v446 = vpack.c.bf16 %v418, %v414
      %v447 = vpack.c.bf16 %v419, %v415
      %v448 = vpack.c.bf16 %v420, %v416
      %v449 = vpack.c.bf16 %v425, %v421
      %v450 = vpack.c.bf16 %v426, %v422
      %v451 = vpack.c.bf16 %v427, %v423
      %v452 = vpack.c.bf16 %v428, %v424
      %v453 = vpack.c.bf16 %v433, %v429
      %v454 = vpack.c.bf16 %v434, %v430
      %v455 = vpack.c.bf16 %v435, %v431
      %v456 = vpack.c.bf16 %v436, %v432
      %v457 = vpack.c.bf16 %v437, %v437
      %v458 = vpack.c.bf16 %v438, %v438
      %v459 = vpack.c.bf16 %v439, %v439
      %v460 = vpack.c.bf16 %v440, %v440
      %v461 = vld [vmem:[%s2] sm:$0xf]
      %v462 = vld [vmem:[%s2 + $0x4] sm:$0xf]
      %v463 = vld [vmem:[%s2 + $0x8] sm:$0xf]
      %v464 = vld [vmem:[%s2 + $0xc] sm:$0xf]
      %v469 = vunpack.c.l.b16 %v461
      %v470 = vunpack.c.l.b16 %v462
      %v471 = vunpack.c.l.b16 %v463
      %v472 = vunpack.c.l.b16 %v464
      %v473 = vpack.c.b16 %v470, %v469
      %v474 = vpack.c.b16 %v472, %v471
      %vm475 = vcmask 588800
      %v477 = vsel %vm475, %v473, 0
      %v480 = vsel %vm475, %v474, 0
      %vm482 = vcmask 1043456
      %v484 = vsel %vm482, %v457, 0
      %v487 = vsel %vm482, %v458, 0
      %v490 = vsel %vm482, %v459, 0
      %v493 = vsel %vm482, %v460, 0
      %495 = vmatprep.subr.bf16.mxu0 %v442
      %496 = vmatpush1.bf16.msra.mxu0 %v441
      %497 = vmatprep.subr.bf16.mxu0 %v446
      %498 = vmatpush1.bf16.msra.mxu0 %v445
      %499 = vmatprep.subr.bf16.mxu0 %v450
      %500 = vmatpush1.bf16.msra.mxu0 %v449
      %501 = vmatprep.subr.bf16.mxu0 %v454
      %502 = vmatpush1.bf16.msra.mxu0 %v453
      %503 = vmatprep.subr.bf16.mxu0 %v487
      %504 = vmatpush1.bf16.msra.mxu0 %v484
      %505 = vmatprep.subr.bf16.mxu0 0
      %506 = vmatpush1.bf16.msra.mxu0 0
      %507 = vmatprep.subr.bf16.mxu0 0
      %508 = vmatpush1.bf16.msra.mxu0 0
      %509 = vmatprep.subr.bf16.mxu0 0
      %510 = vmatpush1.bf16.msra.mxu0 0
      %511 = vmatprep.subr.bf16.mxu0 0
      %512 = vmatpush1.bf16.msra.mxu0 0
      %513 = vmatprep.subr.bf16.mxu0 0
      %514 = vmatpush1.bf16.msra.mxu0 0
      %515 = vmatprep.subr.bf16.mxu0 0
      %516 = vmatpush1.bf16.msra.mxu0 0
      %517 = vmatprep.subr.bf16.mxu0 0
      %518 = vmatpush1.bf16.msra.mxu0 0
      %519 = vmatprep.subr.bf16.mxu0 0
      %520 = vmatpush1.bf16.msra.mxu0 0
      %521 = vmatprep.subr.bf16.mxu0 0
      %522 = vmatpush1.bf16.msra.mxu0 0
      %523 = vmatprep.subr.bf16.mxu0 0
      %524 = vmatpush1.bf16.msra.mxu0 0
      %525 = vmatprep.subr.bf16.mxu0 0
      %526 = vmatpush1.bf16.msra.mxu0 0
      %527 = vmatprep.mubr.bf16.mxu0 0
      %528 = vmatmul.mubr.bf16.gmra.mrb[0].mxu0 %v477
      %v529 = vpop.f32.mrb[0].mxu0
      %v530 = vadd.f32 0.0, %v529
      %v531 = vpop.f32.mrb[0].mxu0
      %v532 = vadd.f32 0.0, %v531
      %v533 = vpop.f32.mrb[0].mxu0
      %v534 = vadd.f32 0.0, %v533
      %v535 = vpop.f32.mrb[0].mxu0
      %v536 = vadd.f32 0.0, %v535
      %537 = vmatprep.mubr.bf16.mxu0 0
      %538 = vmatmul.mubr.bf16.gmra.mrb[0].mxu0 %v480
      %v539 = vpop.f32.mrb[0].mxu0
      %v540 = vadd.f32 0.0, %v539
      %v541 = vpop.f32.mrb[0].mxu0
      %v542 = vadd.f32 0.0, %v541
      %v543 = vpop.f32.mrb[0].mxu0
      %v544 = vadd.f32 0.0, %v543
      %v545 = vpop.f32.mrb[0].mxu0
      %v546 = vadd.f32 0.0, %v545
      %547 = vdwg.mxu0
      %548 = vmatprep.subr.bf16.mxu0 %v444
      %549 = vmatpush1.bf16.msra.mxu0 %v443
      %550 = vmatprep.subr.bf16.mxu0 %v448
      %551 = vmatpush1.bf16.msra.mxu0 %v447
      %552 = vmatprep.subr.bf16.mxu0 %v452
      %553 = vmatpush1.bf16.msra.mxu0 %v451
      %554 = vmatprep.subr.bf16.mxu0 %v456
      %555 = vmatpush1.bf16.msra.mxu0 %v455
      %556 = vmatprep.subr.bf16.mxu0 %v493
      %557 = vmatpush1.bf16.msra.mxu0 %v490
      %558 = vmatprep.subr.bf16.mxu0 0
      %559 = vmatpush1.bf16.msra.mxu0 0
      %560 = vmatprep.subr.bf16.mxu0 0
      %561 = vmatpush1.bf16.msra.mxu0 0
      %562 = vmatprep.subr.bf16.mxu0 0
      %563 = vmatpush1.bf16.msra.mxu0 0
      %564 = vmatprep.subr.bf16.mxu0 0
      %565 = vmatpush1.bf16.msra.mxu0 0
      %566 = vmatprep.subr.bf16.mxu0 0
      %567 = vmatpush1.bf16.msra.mxu0 0
      %568 = vmatprep.subr.bf16.mxu0 0
      %569 = vmatpush1.bf16.msra.mxu0 0
      %570 = vmatprep.subr.bf16.mxu0 0
      %571 = vmatpush1.bf16.msra.mxu0 0
      %572 = vmatprep.subr.bf16.mxu0 0
      %573 = vmatpush1.bf16.msra.mxu0 0
      %574 = vmatprep.subr.bf16.mxu0 0
      %575 = vmatpush1.bf16.msra.mxu0 0
      %576 = vmatprep.subr.bf16.mxu0 0
      %577 = vmatpush1.bf16.msra.mxu0 0
      %578 = vmatprep.subr.bf16.mxu0 0
      %579 = vmatpush1.bf16.msra.mxu0 0
      %580 = vmatprep.mubr.bf16.mxu0 0
      %581 = vmatmul.mubr.bf16.gmra.mrb[0].mxu0 %v477
      %v582 = vpop.f32.mrb[0].mxu0
      %v583 = vadd.f32 0.0, %v582
      %v584 = vpop.f32.mrb[0].mxu0
      %v585 = vadd.f32 0.0, %v584
      %v586 = vpop.f32.mrb[0].mxu0
      %v587 = vadd.f32 0.0, %v586
      %v588 = vpop.f32.mrb[0].mxu0
      %v589 = vadd.f32 0.0, %v588
      %590 = vmatprep.mubr.bf16.mxu0 0
      %591 = vmatmul.mubr.bf16.gmra.mrb[0].mxu0 %v480
      %v592 = vpop.f32.mrb[0].mxu0
      %v593 = vadd.f32 0.0, %v592
      %v594 = vpop.f32.mrb[0].mxu0
      %v595 = vadd.f32 0.0, %v594
      %v596 = vpop.f32.mrb[0].mxu0
      %v597 = vadd.f32 0.0, %v596
      %v598 = vpop.f32.mrb[0].mxu0
      %v599 = vadd.f32 0.0, %v598
      %600 = vdwg.mxu0
      %v601 = vpack.c.bf16 %v534, %v530
      %v602 = vpack.c.bf16 %v536, %v532
      %v603 = vpack.c.bf16 %v587, %v583
      %v604 = vpack.c.bf16 %v589, %v585
      %v605 = vpack.c.bf16 %v544, %v540
      %v606 = vpack.c.bf16 %v546, %v542
      %v607 = vpack.c.bf16 %v597, %v593
      %v608 = vpack.c.bf16 %v599, %v595
      %v609 = vld [vmem:[%s2 + $0x10] sm:$0xf]
      %v610 = vld [vmem:[%s2 + $0x14] sm:$0xf]
      %v611 = vld [vmem:[%s2 + $0x18] sm:$0xf]
      %v612 = vld [vmem:[%s2 + $0x1c] sm:$0xf]
      %v613 = vld [vmem:[%s2 + $0x20] sm:$0xf]
      %v614 = vld [vmem:[%s2 + $0x24] sm:$0xf]
      %v615 = vld [vmem:[%s2 + $0x28] sm:$0xf]
      %v616 = vld [vmem:[%s2 + $0x2c] sm:$0xf]
      %v617 = vld [vmem:[%s3] sm:$0xff]
      %v618 = vld [vmem:[%s3 + $0x8] sm:$0xff]
      %v619 = vld [vmem:[%s3 + $0x10] sm:$0xff]
      %v620 = vld [vmem:[%s3 + $0x18] sm:$0xff]
      %v621 = vld [vmem:[%s3 + $0x20] sm:$0xff]
      %v622 = vld [vmem:[%s3 + $0x28] sm:$0xff]
      %v623 = vld [vmem:[%s3 + $0x30] sm:$0xff]
      %v624 = vld [vmem:[%s3 + $0x38] sm:$0xff]
      %626 = vset.pattern.permute.xlu0 0
      %627 = vperm.xlu0 %626, %v617
      %v628 = vpop.permute.xlu0 %627
      %631 = vset.pattern.permute.xlu0 0
      %632 = vperm.xlu0 %631, %v618
      %v633 = vpop.permute.xlu0 %632
      %636 = vset.pattern.permute.xlu0 0
      %637 = vperm.xlu0 %636, %v619
      %v638 = vpop.permute.xlu0 %637
      %641 = vset.pattern.permute.xlu0 0
      %642 = vperm.xlu0 %641, %v620
      %v643 = vpop.permute.xlu0 %642
      %646 = vset.pattern.permute.xlu0 0
      %647 = vperm.xlu0 %646, %v621
      %v648 = vpop.permute.xlu0 %647
      %651 = vset.pattern.permute.xlu0 0
      %652 = vperm.xlu0 %651, %v622
      %v653 = vpop.permute.xlu0 %652
      %656 = vset.pattern.permute.xlu0 0
      %657 = vperm.xlu0 %656, %v623
      %v658 = vpop.permute.xlu0 %657
      %661 = vset.pattern.permute.xlu0 0
      %662 = vperm.xlu0 %661, %v624
      %v663 = vpop.permute.xlu0 %662
      %v673 = vunpack.c.l.b16 %v609
      %v674 = vunpack.c.l.b16 %v610
      %v675 = vunpack.c.l.b16 %v611
      %v676 = vunpack.c.l.b16 %v612
      %v677 = vunpack.c.l.b16 %v613
      %v678 = vunpack.c.l.b16 %v614
      %v679 = vunpack.c.l.b16 %v615
      %v680 = vunpack.c.l.b16 %v616
      %v681 = vpack.c.b16 %v674, %v673
      %v682 = vpack.c.b16 %v676, %v675
      %v683 = vpack.c.b16 %v678, %v677
      %v684 = vpack.c.b16 %v680, %v679
      %vm685 = vcmask 261120
      %v687 = vsel %vm685, %v681, 0
      %v690 = vsel %vm685, %v682, 0
      %v693 = vsel %vm685, %v683, 0
      %v696 = vsel %vm685, %v684, 0
      %698 = vmatprep.subr.bf16.mxu0 %v602
      %699 = vmatpush1.bf16.msra.mxu0 %v601
      %700 = vmatprep.subr.bf16.mxu0 %v606
      %701 = vmatpush1.bf16.msra.mxu0 %v605
      %702 = vmatprep.subr.bf16.mxu0 0
      %703 = vmatpush1.bf16.msra.mxu0 0
      %704 = vmatprep.subr.bf16.mxu0 0
      %705 = vmatpush1.bf16.msra.mxu0 0
      %706 = vmatprep.subr.bf16.mxu0 0
      %707 = vmatpush1.bf16.msra.mxu0 0
      %708 = vmatprep.subr.bf16.mxu0 0
      %709 = vmatpush1.bf16.msra.mxu0 0
      %710 = vmatprep.subr.bf16.mxu0 0
      %711 = vmatpush1.bf16.msra.mxu0 0
      %712 = vmatprep.subr.bf16.mxu0 0
      %713 = vmatpush1.bf16.msra.mxu0 0
      %714 = vmatprep.subr.bf16.mxu0 0
      %715 = vmatpush1.bf16.msra.mxu0 0
      %716 = vmatprep.subr.bf16.mxu0 0
      %717 = vmatpush1.bf16.msra.mxu0 0
      %718 = vmatprep.subr.bf16.mxu0 0
      %719 = vmatpush1.bf16.msra.mxu0 0
      %720 = vmatprep.subr.bf16.mxu0 0
      %721 = vmatpush1.bf16.msra.mxu0 0
      %722 = vmatprep.subr.bf16.mxu0 0
      %723 = vmatpush1.bf16.msra.mxu0 0
      %724 = vmatprep.subr.bf16.mxu0 0
      %725 = vmatpush1.bf16.msra.mxu0 0
      %726 = vmatprep.subr.bf16.mxu0 0
      %727 = vmatpush1.bf16.msra.mxu0 0
      %728 = vmatprep.subr.bf16.mxu0 0
      %729 = vmatpush1.bf16.msra.mxu0 0
      %730 = vmatprep.mubr.bf16.mxu0 0
      %731 = vmatmul.mubr.bf16.gmra.mrb[0].mxu0 %v687
      %v732 = vpop.f32.mrb[0].mxu0
      %v733 = vadd.f32 %v628, %v732
      %v734 = vpop.f32.mrb[0].mxu0
      %v735 = vadd.f32 %v628, %v734
      %v736 = vpop.f32.mrb[0].mxu0
      %v737 = vadd.f32 %v633, %v736
      %v738 = vpop.f32.mrb[0].mxu0
      %v739 = vadd.f32 %v633, %v738
      %740 = vmatprep.mubr.bf16.mxu0 0
      %741 = vmatmul.mubr.bf16.gmra.mrb[0].mxu0 %v690
      %v742 = vpop.f32.mrb[0].mxu0
      %v743 = vadd.f32 %v638, %v742
      %v744 = vpop.f32.mrb[0].mxu0
      %v745 = vadd.f32 %v638, %v744
      %v746 = vpop.f32.mrb[0].mxu0
      %v747 = vadd.f32 %v643, %v746
      %v748 = vpop.f32.mrb[0].mxu0
      %v749 = vadd.f32 %v643, %v748
      %750 = vmatprep.mubr.bf16.mxu0 0
      %751 = vmatmul.mubr.bf16.gmra.mrb[0].mxu0 %v693
      %v752 = vpop.f32.mrb[0].mxu0
      %v753 = vadd.f32 %v648, %v752
      %v754 = vpop.f32.mrb[0].mxu0
      %v755 = vadd.f32 %v648, %v754
      %v756 = vpop.f32.mrb[0].mxu0
      %v757 = vadd.f32 %v653, %v756
      %v758 = vpop.f32.mrb[0].mxu0
      %v759 = vadd.f32 %v653, %v758
      %760 = vmatprep.mubr.bf16.mxu0 0
      %761 = vmatmul.mubr.bf16.gmra.mrb[0].mxu0 %v696
      %v762 = vpop.f32.mrb[0].mxu0
      %v763 = vadd.f32 %v658, %v762
      %v764 = vpop.f32.mrb[0].mxu0
      %v765 = vadd.f32 %v658, %v764
      %v766 = vpop.f32.mrb[0].mxu0
      %v767 = vadd.f32 %v663, %v766
      %v768 = vpop.f32.mrb[0].mxu0
      %v769 = vadd.f32 %v663, %v768
      %770 = vdwg.mxu0
      %771 = vmatprep.subr.bf16.mxu0 %v604
      %772 = vmatpush1.bf16.msra.mxu0 %v603
      %773 = vmatprep.subr.bf16.mxu0 %v608
      %774 = vmatpush1.bf16.msra.mxu0 %v607
      %775 = vmatprep.subr.bf16.mxu0 0
      %776 = vmatpush1.bf16.msra.mxu0 0
      %777 = vmatprep.subr.bf16.mxu0 0
      %778 = vmatpush1.bf16.msra.mxu0 0
      %779 = vmatprep.subr.bf16.mxu0 0
      %780 = vmatpush1.bf16.msra.mxu0 0
      %781 = vmatprep.subr.bf16.mxu0 0
      %782 = vmatpush1.bf16.msra.mxu0 0
      %783 = vmatprep.subr.bf16.mxu0 0
      %784 = vmatpush1.bf16.msra.mxu0 0
      %785 = vmatprep.subr.bf16.mxu0 0
      %786 = vmatpush1.bf16.msra.mxu0 0
      %787 = vmatprep.subr.bf16.mxu0 0
      %788 = vmatpush1.bf16.msra.mxu0 0
      %789 = vmatprep.subr.bf16.mxu0 0
      %790 = vmatpush1.bf16.msra.mxu0 0
      %791 = vmatprep.subr.bf16.mxu0 0
      %792 = vmatpush1.bf16.msra.mxu0 0
      %793 = vmatprep.subr.bf16.mxu0 0
      %794 = vmatpush1.bf16.msra.mxu0 0
      %795 = vmatprep.subr.bf16.mxu0 0
      %796 = vmatpush1.bf16.msra.mxu0 0
      %797 = vmatprep.subr.bf16.mxu0 0
      %798 = vmatpush1.bf16.msra.mxu0 0
      %799 = vmatprep.subr.bf16.mxu0 0
      %800 = vmatpush1.bf16.msra.mxu0 0
      %801 = vmatprep.subr.bf16.mxu0 0
      %802 = vmatpush1.bf16.msra.mxu0 0
      %803 = vmatprep.mubr.bf16.mxu0 0
      %804 = vmatmul.mubr.bf16.gmra.mrb[0].mxu0 %v687
      %v805 = vpop.f32.mrb[0].mxu0
      %v806 = vadd.f32 %v628, %v805
      %v807 = vpop.f32.mrb[0].mxu0
      %v808 = vadd.f32 %v628, %v807
      %v809 = vpop.f32.mrb[0].mxu0
      %v810 = vadd.f32 %v633, %v809
      %v811 = vpop.f32.mrb[0].mxu0
      %v812 = vadd.f32 %v633, %v811
      %813 = vmatprep.mubr.bf16.mxu0 0
      %814 = vmatmul.mubr.bf16.gmra.mrb[0].mxu0 %v690
      %v815 = vpop.f32.mrb[0].mxu0
      %v816 = vadd.f32 %v638, %v815
      %v817 = vpop.f32.mrb[0].mxu0
      %v818 = vadd.f32 %v638, %v817
      %v819 = vpop.f32.mrb[0].mxu0
      %v820 = vadd.f32 %v643, %v819
      %v821 = vpop.f32.mrb[0].mxu0
      %v822 = vadd.f32 %v643, %v821
      %823 = vmatprep.mubr.bf16.mxu0 0
      %824 = vmatmul.mubr.bf16.gmra.mrb[0].mxu0 %v693
      %v825 = vpop.f32.mrb[0].mxu0
      %v826 = vadd.f32 %v648, %v825
      %v827 = vpop.f32.mrb[0].mxu0
      %v828 = vadd.f32 %v648, %v827
      %v829 = vpop.f32.mrb[0].mxu0
      %v830 = vadd.f32 %v653, %v829
      %v831 = vpop.f32.mrb[0].mxu0
      %v832 = vadd.f32 %v653, %v831
      %833 = vmatprep.mubr.bf16.mxu0 0
      %834 = vmatmul.mubr.bf16.gmra.mrb[0].mxu0 %v696
      %v835 = vpop.f32.mrb[0].mxu0
      %v836 = vadd.f32 %v658, %v835
      %v837 = vpop.f32.mrb[0].mxu0
      %v838 = vadd.f32 %v658, %v837
      %v839 = vpop.f32.mrb[0].mxu0
      %v840 = vadd.f32 %v663, %v839
      %v841 = vpop.f32.mrb[0].mxu0
      %v842 = vadd.f32 %v663, %v841
      %843 = vdwg.mxu0
      %v844 = vmax.f32 %v733, 0.0
      %v845 = vmax.f32 %v735, 0.0
      %v846 = vmax.f32 %v806, 0.0
      %v847 = vmax.f32 %v808, 0.0
      %v848 = vmax.f32 %v737, 0.0
      %v849 = vmax.f32 %v739, 0.0
      %v850 = vmax.f32 %v810, 0.0
      %v851 = vmax.f32 %v812, 0.0
      %v852 = vmax.f32 %v743, 0.0
      %v853 = vmax.f32 %v745, 0.0
      %v854 = vmax.f32 %v816, 0.0
      %v855 = vmax.f32 %v818, 0.0
      %v856 = vmax.f32 %v747, 0.0
      %v857 = vmax.f32 %v749, 0.0
      %v858 = vmax.f32 %v820, 0.0
      %v859 = vmax.f32 %v822, 0.0
      %v860 = vmax.f32 %v753, 0.0
      %v861 = vmax.f32 %v755, 0.0
      %v862 = vmax.f32 %v826, 0.0
      %v863 = vmax.f32 %v828, 0.0
      %v864 = vmax.f32 %v757, 0.0
      %v865 = vmax.f32 %v759, 0.0
      %v866 = vmax.f32 %v830, 0.0
      %v867 = vmax.f32 %v832, 0.0
      %v868 = vmax.f32 %v763, 0.0
      %v869 = vmax.f32 %v765, 0.0
      %v870 = vmax.f32 %v836, 0.0
      %v871 = vmax.f32 %v838, 0.0
      %v872 = vmax.f32 %v767, 0.0
      %v873 = vmax.f32 %v769, 0.0
      %v874 = vmax.f32 %v840, 0.0
      %v875 = vmax.f32 %v842, 0.0
      %v876 = vpack.c.bf16 %v848, %v844
      %v877 = vpack.c.bf16 %v849, %v845
      %v878 = vpack.c.bf16 %v850, %v846
      %v879 = vpack.c.bf16 %v851, %v847
      %v880 = vpack.c.bf16 %v856, %v852
      %v881 = vpack.c.bf16 %v857, %v853
      %v882 = vpack.c.bf16 %v858, %v854
      %v883 = vpack.c.bf16 %v859, %v855
      %v884 = vpack.c.bf16 %v864, %v860
      %v885 = vpack.c.bf16 %v865, %v861
      %v886 = vpack.c.bf16 %v866, %v862
      %v887 = vpack.c.bf16 %v867, %v863
      %v888 = vpack.c.bf16 %v872, %v868
      %v889 = vpack.c.bf16 %v873, %v869
      %v890 = vpack.c.bf16 %v874, %v870
      %v891 = vpack.c.bf16 %v875, %v871
      %v892 = vld [vmem:[%s2 + $0x30] sm:$0xf]
      %v893 = vld [vmem:[%s2 + $0x34] sm:$0xf]
      %v894 = vld [vmem:[%s2 + $0x38] sm:$0xf]
      %v895 = vld [vmem:[%s2 + $0x3c] sm:$0xf]
      %v896 = vld [vmem:[%s3 + $0x40] sm:$0xff]
      %v897 = vld [vmem:[%s3 + $0x48] sm:$0xff]
      %v898 = vld [vmem:[%s3 + $0x50] sm:$0xff]
      %v899 = vld [vmem:[%s3 + $0x58] sm:$0xff]
      %901 = vset.pattern.permute.xlu0 0
      %902 = vperm.xlu0 %901, %v896
      %v903 = vpop.permute.xlu0 %902
      %906 = vset.pattern.permute.xlu0 0
      %907 = vperm.xlu0 %906, %v897
      %v908 = vpop.permute.xlu0 %907
      %911 = vset.pattern.permute.xlu0 0
      %912 = vperm.xlu0 %911, %v898
      %v913 = vpop.permute.xlu0 %912
      %916 = vset.pattern.permute.xlu0 0
      %917 = vperm.xlu0 %916, %v899
      %v918 = vpop.permute.xlu0 %917
      %v924 = vunpack.c.l.b16 %v892
      %v925 = vunpack.c.l.b16 %v893
      %v926 = vunpack.c.l.b16 %v894
      %v927 = vunpack.c.l.b16 %v895
      %v928 = vpack.c.b16 %v925, %v924
      %v929 = vpack.c.b16 %v927, %v926
      %vm930 = vcmask 523264
      %v932 = vsel %vm930, %v928, 0
      %v935 = vsel %vm930, %v929, 0
      %937 = vmatprep.subr.bf16.mxu0 %v877
      %938 = vmatpush1.bf16.msra.mxu0 %v876
      %939 = vmatprep.subr.bf16.mxu0 %v881
      %940 = vmatpush1.bf16.msra.mxu0 %v880
      %941 = vmatprep.subr.bf16.mxu0 %v885
      %942 = vmatpush1.bf16.msra.mxu0 %v884
      %943 = vmatprep.subr.bf16.mxu0 %v889
      %944 = vmatpush1.bf16.msra.mxu0 %v888
      %945 = vmatprep.subr.bf16.mxu0 0
      %946 = vmatpush1.bf16.msra.mxu0 0
      %947 = vmatprep.subr.bf16.mxu0 0
      %948 = vmatpush1.bf16.msra.mxu0 0
      %949 = vmatprep.subr.bf16.mxu0 0
      %950 = vmatpush1.bf16.msra.mxu0 0
      %951 = vmatprep.subr.bf16.mxu0 0
      %952 = vmatpush1.bf16.msra.mxu0 0
      %953 = vmatprep.subr.bf16.mxu0 0
      %954 = vmatpush1.bf16.msra.mxu0 0
      %955 = vmatprep.subr.bf16.mxu0 0
      %956 = vmatpush1.bf16.msra.mxu0 0
      %957 = vmatprep.subr.bf16.mxu0 0
      %958 = vmatpush1.bf16.msra.mxu0 0
      %959 = vmatprep.subr.bf16.mxu0 0
      %960 = vmatpush1.bf16.msra.mxu0 0
      %961 = vmatprep.subr.bf16.mxu0 0
      %962 = vmatpush1.bf16.msra.mxu0 0
      %963 = vmatprep.subr.bf16.mxu0 0
      %964 = vmatpush1.bf16.msra.mxu0 0
      %965 = vmatprep.subr.bf16.mxu0 0
      %966 = vmatpush1.bf16.msra.mxu0 0
      %967 = vmatprep.subr.bf16.mxu0 0
      %968 = vmatpush1.bf16.msra.mxu0 0
      %969 = vmatprep.mubr.bf16.mxu0 0
      %970 = vmatmul.mubr.bf16.gmra.mrb[0].mxu0 %v932
      %v971 = vpop.f32.mrb[0].mxu0
      %v972 = vadd.f32 %v903, %v971
      %v973 = vpop.f32.mrb[0].mxu0
      %v974 = vadd.f32 %v903, %v973
      %v975 = vpop.f32.mrb[0].mxu0
      %v976 = vadd.f32 %v908, %v975
      %v977 = vpop.f32.mrb[0].mxu0
      %v978 = vadd.f32 %v908, %v977
      %979 = vmatprep.mubr.bf16.mxu0 0
      %980 = vmatmul.mubr.bf16.gmra.mrb[0].mxu0 %v935
      %v981 = vpop.f32.mrb[0].mxu0
      %v982 = vadd.f32 %v913, %v981
      %v983 = vpop.f32.mrb[0].mxu0
      %v984 = vadd.f32 %v913, %v983
      %v985 = vpop.f32.mrb[0].mxu0
      %v986 = vadd.f32 %v918, %v985
      %v987 = vpop.f32.mrb[0].mxu0
      %v988 = vadd.f32 %v918, %v987
      %989 = vdwg.mxu0
      %990 = vmatprep.subr.bf16.mxu0 %v879
      %991 = vmatpush1.bf16.msra.mxu0 %v878
      %992 = vmatprep.subr.bf16.mxu0 %v883
      %993 = vmatpush1.bf16.msra.mxu0 %v882
      %994 = vmatprep.subr.bf16.mxu0 %v887
      %995 = vmatpush1.bf16.msra.mxu0 %v886
      %996 = vmatprep.subr.bf16.mxu0 %v891
      %997 = vmatpush1.bf16.msra.mxu0 %v890
      %998 = vmatprep.subr.bf16.mxu0 0
      %999 = vmatpush1.bf16.msra.mxu0 0
      %1000 = vmatprep.subr.bf16.mxu0 0
      %1001 = vmatpush1.bf16.msra.mxu0 0
      %1002 = vmatprep.subr.bf16.mxu0 0
      %1003 = vmatpush1.bf16.msra.mxu0 0
      %1004 = vmatprep.subr.bf16.mxu0 0
      %1005 = vmatpush1.bf16.msra.mxu0 0
      %1006 = vmatprep.subr.bf16.mxu0 0
      %1007 = vmatpush1.bf16.msra.mxu0 0
      %1008 = vmatprep.subr.bf16.mxu0 0
      %1009 = vmatpush1.bf16.msra.mxu0 0
      %1010 = vmatprep.subr.bf16.mxu0 0
      %1011 = vmatpush1.bf16.msra.mxu0 0
      %1012 = vmatprep.subr.bf16.mxu0 0
      %1013 = vmatpush1.bf16.msra.mxu0 0
      %1014 = vmatprep.subr.bf16.mxu0 0
      %1015 = vmatpush1.bf16.msra.mxu0 0
      %1016 = vmatprep.subr.bf16.mxu0 0
      %1017 = vmatpush1.bf16.msra.mxu0 0
      %1018 = vmatprep.subr.bf16.mxu0 0
      %1019 = vmatpush1.bf16.msra.mxu0 0
      %1020 = vmatprep.subr.bf16.mxu0 0
      %1021 = vmatpush1.bf16.msra.mxu0 0
      %1022 = vmatprep.mubr.bf16.mxu0 0
      %1023 = vmatmul.mubr.bf16.gmra.mrb[0].mxu0 %v932
      %v1024 = vpop.f32.mrb[0].mxu0
      %v1025 = vadd.f32 %v903, %v1024
      %v1026 = vpop.f32.mrb[0].mxu0
      %v1027 = vadd.f32 %v903, %v1026
      %v1028 = vpop.f32.mrb[0].mxu0
      %v1029 = vadd.f32 %v908, %v1028
      %v1030 = vpop.f32.mrb[0].mxu0
      %v1031 = vadd.f32 %v908, %v1030
      %1032 = vmatprep.mubr.bf16.mxu0 0
      %1033 = vmatmul.mubr.bf16.gmra.mrb[0].mxu0 %v935
      %v1034 = vpop.f32.mrb[0].mxu0
      %v1035 = vadd.f32 %v913, %v1034
      %v1036 = vpop.f32.mrb[0].mxu0
      %v1037 = vadd.f32 %v913, %v1036
      %v1038 = vpop.f32.mrb[0].mxu0
      %v1039 = vadd.f32 %v918, %v1038
      %v1040 = vpop.f32.mrb[0].mxu0
      %v1041 = vadd.f32 %v918, %v1040
      %1042 = vdwg.mxu0
      %v1043 = vmax.f32 %v972, 0.0
      %v1044 = vmax.f32 %v974, 0.0
      %v1045 = vmax.f32 %v1025, 0.0
      %v1046 = vmax.f32 %v1027, 0.0
      %v1047 = vmax.f32 %v976, 0.0
      %v1048 = vmax.f32 %v978, 0.0
      %v1049 = vmax.f32 %v1029, 0.0
      %v1050 = vmax.f32 %v1031, 0.0
      %v1051 = vmax.f32 %v982, 0.0
      %v1052 = vmax.f32 %v984, 0.0
      %v1053 = vmax.f32 %v1035, 0.0
      %v1054 = vmax.f32 %v1037, 0.0
      %v1055 = vmax.f32 %v986, 0.0
      %v1056 = vmax.f32 %v988, 0.0
      %v1057 = vmax.f32 %v1039, 0.0
      %v1058 = vmax.f32 %v1041, 0.0
      %v1059 = vpack.c.bf16 %v1047, %v1043
      %v1060 = vpack.c.bf16 %v1048, %v1044
      %v1061 = vpack.c.bf16 %v1049, %v1045
      %v1062 = vpack.c.bf16 %v1050, %v1046
      %v1063 = vpack.c.bf16 %v1055, %v1051
      %v1064 = vpack.c.bf16 %v1056, %v1052
      %v1065 = vpack.c.bf16 %v1057, %v1053
      %v1066 = vpack.c.bf16 %v1058, %v1054
      %v1067 = vld [vmem:[%s2 + $0x40] sm:$0xf]
      %v1068 = vld [vmem:[%s2 + $0x44] sm:$0xf]
      %v1069 = vld [vmem:[%s3 + $0x60] sm:$0xff]
      %v1070 = vld [vmem:[%s3 + $0x68] sm:$0xff]
      %1072 = vset.pattern.permute.xlu0 0
      %1073 = vperm.xlu0 %1072, %v1069
      %v1074 = vpop.permute.xlu0 %1073
      %1077 = vset.pattern.permute.xlu0 0
      %1078 = vperm.xlu0 %1077, %v1070
      %v1079 = vpop.permute.xlu0 %1078
      %v1083 = vunpack.c.l.b16 %v1067
      %v1084 = vunpack.c.l.b16 %v1068
      %v1085 = vpack.c.b16 %v1084, %v1083
      %v1087 = vsel %vm685, %v1085, 0
      %1089 = vmatprep.subr.bf16.mxu0 %v1060
      %1090 = vmatpush1.bf16.msra.mxu0 %v1059
      %1091 = vmatprep.subr.bf16.mxu0 %v1064
      %1092 = vmatpush1.bf16.msra.mxu0 %v1063
      %1093 = vmatprep.subr.bf16.mxu0 0
      %1094 = vmatpush1.bf16.msra.mxu0 0
      %1095 = vmatprep.subr.bf16.mxu0 0
      %1096 = vmatpush1.bf16.msra.mxu0 0
      %1097 = vmatprep.subr.bf16.mxu0 0
      %1098 = vmatpush1.bf16.msra.mxu0 0
      %1099 = vmatprep.subr.bf16.mxu0 0
      %1100 = vmatpush1.bf16.msra.mxu0 0
      %1101 = vmatprep.subr.bf16.mxu0 0
      %1102 = vmatpush1.bf16.msra.mxu0 0
      %1103 = vmatprep.subr.bf16.mxu0 0
      %1104 = vmatpush1.bf16.msra.mxu0 0
      %1105 = vmatprep.subr.bf16.mxu0 0
      %1106 = vmatpush1.bf16.msra.mxu0 0
      %1107 = vmatprep.subr.bf16.mxu0 0
      %1108 = vmatpush1.bf16.msra.mxu0 0
      %1109 = vmatprep.subr.bf16.mxu0 0
      %1110 = vmatpush1.bf16.msra.mxu0 0
      %1111 = vmatprep.subr.bf16.mxu0 0
      %1112 = vmatpush1.bf16.msra.mxu0 0
      %1113 = vmatprep.subr.bf16.mxu0 0
      %1114 = vmatpush1.bf16.msra.mxu0 0
      %1115 = vmatprep.subr.bf16.mxu0 0
      %1116 = vmatpush1.bf16.msra.mxu0 0
      %1117 = vmatprep.subr.bf16.mxu0 0
      %1118 = vmatpush1.bf16.msra.mxu0 0
      %1119 = vmatprep.subr.bf16.mxu0 0
      %1120 = vmatpush1.bf16.msra.mxu0 0
      %1121 = vmatprep.mubr.bf16.mxu0 0
      %1122 = vmatmul.mubr.bf16.gmra.mrb[0].mxu0 %v1087
      %v1123 = vpop.f32.mrb[0].mxu0
      %v1124 = vadd.f32 %v1074, %v1123
      %v1125 = vpop.f32.mrb[0].mxu0
      %v1126 = vadd.f32 %v1074, %v1125
      %v1127 = vpop.f32.mrb[0].mxu0
      %v1128 = vadd.f32 %v1079, %v1127
      %v1129 = vpop.f32.mrb[0].mxu0
      %v1130 = vadd.f32 %v1079, %v1129
      %1131 = vdwg.mxu0
      %1132 = vmatprep.subr.bf16.mxu0 %v1062
      %1133 = vmatpush1.bf16.msra.mxu0 %v1061
      %1134 = vmatprep.subr.bf16.mxu0 %v1066
      %1135 = vmatpush1.bf16.msra.mxu0 %v1065
      %1136 = vmatprep.subr.bf16.mxu0 0
      %1137 = vmatpush1.bf16.msra.mxu0 0
      %1138 = vmatprep.subr.bf16.mxu0 0
      %1139 = vmatpush1.bf16.msra.mxu0 0
      %1140 = vmatprep.subr.bf16.mxu0 0
      %1141 = vmatpush1.bf16.msra.mxu0 0
      %1142 = vmatprep.subr.bf16.mxu0 0
      %1143 = vmatpush1.bf16.msra.mxu0 0
      %1144 = vmatprep.subr.bf16.mxu0 0
      %1145 = vmatpush1.bf16.msra.mxu0 0
      %1146 = vmatprep.subr.bf16.mxu0 0
      %1147 = vmatpush1.bf16.msra.mxu0 0
      %1148 = vmatprep.subr.bf16.mxu0 0
      %1149 = vmatpush1.bf16.msra.mxu0 0
      %1150 = vmatprep.subr.bf16.mxu0 0
      %1151 = vmatpush1.bf16.msra.mxu0 0
      %1152 = vmatprep.subr.bf16.mxu0 0
      %1153 = vmatpush1.bf16.msra.mxu0 0
      %1154 = vmatprep.subr.bf16.mxu0 0
      %1155 = vmatpush1.bf16.msra.mxu0 0
      %1156 = vmatprep.subr.bf16.mxu0 0
      %1157 = vmatpush1.bf16.msra.mxu0 0
      %1158 = vmatprep.subr.bf16.mxu0 0
      %1159 = vmatpush1.bf16.msra.mxu0 0
      %1160 = vmatprep.subr.bf16.mxu0 0
      %1161 = vmatpush1.bf16.msra.mxu0 0
      %1162 = vmatprep.subr.bf16.mxu0 0
      %1163 = vmatpush1.bf16.msra.mxu0 0
      %1164 = vmatprep.mubr.bf16.mxu0 0
      %1165 = vmatmul.mubr.bf16.gmra.mrb[0].mxu0 %v1087
      %v1166 = vpop.f32.mrb[0].mxu0
      %v1167 = vadd.f32 %v1074, %v1166
      %v1168 = vpop.f32.mrb[0].mxu0
      %v1169 = vadd.f32 %v1074, %v1168
      %v1170 = vpop.f32.mrb[0].mxu0
      %v1171 = vadd.f32 %v1079, %v1170
      %v1172 = vpop.f32.mrb[0].mxu0
      %v1173 = vadd.f32 %v1079, %v1172
      %1174 = vdwg.mxu0
      %v1175 = vmax.f32 %v1124, 0.0
      %v1176 = vmax.f32 %v1126, 0.0
      %v1177 = vmax.f32 %v1167, 0.0
      %v1178 = vmax.f32 %v1169, 0.0
      %v1179 = vmax.f32 %v1128, 0.0
      %v1180 = vmax.f32 %v1130, 0.0
      %v1181 = vmax.f32 %v1171, 0.0
      %v1182 = vmax.f32 %v1173, 0.0
      %v1183 = vld [vmem:[%s3 + $0x70] sm:$0x1]
      %v1184 = vld [vmem:[%s2 + $0x48] sm:$0xf]
      %v1185 = vld [vmem:[%s2 + $0x4c] sm:$0xf]
      %v1186 = vunpack.c.l.bf16 %v1184
      %v1187 = vunpack.c.l.bf16 %v1185
      %1189 = vset.pattern.permute.xlu0 0
      %1190 = vperm.xlu0 %1189, %v1186
      %v1191 = vpop.permute.xlu0 %1190
      %1194 = vset.pattern.permute.xlu0 0
      %1195 = vperm.xlu0 %1194, %v1187
      %v1196 = vpop.permute.xlu0 %1195
      %v1198 = vmul.f32 %v1191, %v1175
      %v1199 = vmul.f32 %v1191, %v1176
      %v1200 = vmul.f32 %v1191, %v1177
      %v1201 = vmul.f32 %v1191, %v1178
      %v1202 = vmul.f32 %v1196, %v1179
      %v1203 = vmul.f32 %v1196, %v1180
      %v1204 = vmul.f32 %v1196, %v1181
      %v1205 = vmul.f32 %v1196, %v1182
      %v1206 = vadd.f32 %v1198, %v1202
      %v1207 = vrot.slane %v1206, 4
      %v1208 = vadd.f32 %v1206, %v1207
      %v1209 = vrot.slane %v1208, 2
      %v1210 = vadd.f32 %v1208, %v1209
      %v1211 = vrot.slane %v1210, 1
      %v1212 = vadd.f32 %v1210, %v1211
      %v1213 = vadd.f32 %v1199, %v1203
      %v1214 = vrot.slane %v1213, 4
      %v1215 = vadd.f32 %v1213, %v1214
      %v1216 = vrot.slane %v1215, 2
      %v1217 = vadd.f32 %v1215, %v1216
      %v1218 = vrot.slane %v1217, 1
      %v1219 = vadd.f32 %v1217, %v1218
      %v1220 = vadd.f32 %v1200, %v1204
      %v1221 = vrot.slane %v1220, 4
      %v1222 = vadd.f32 %v1220, %v1221
      %v1223 = vrot.slane %v1222, 2
      %v1224 = vadd.f32 %v1222, %v1223
      %v1225 = vrot.slane %v1224, 1
      %v1226 = vadd.f32 %v1224, %v1225
      %v1227 = vadd.f32 %v1201, %v1205
      %v1228 = vrot.slane %v1227, 4
      %v1229 = vadd.f32 %v1227, %v1228
      %v1230 = vrot.slane %v1229, 2
      %v1231 = vadd.f32 %v1229, %v1230
      %v1232 = vrot.slane %v1231, 1
      %v1233 = vadd.f32 %v1231, %v1232
      %1235 = vset.pattern.permute.xlu0 0
      %1236 = vperm.xlu0 %1235, %v1183
      %v1237 = vpop.permute.xlu0 %1236
      %v1239 = vadd.f32 %v1212, %v1237
      %v1240 = vadd.f32 %v1219, %v1237
      %v1241 = vadd.f32 %v1226, %v1237
      %v1242 = vadd.f32 %v1233, %v1237
      %v1243 = vxor.u32 %v1239, 2147483648
      %v1244 = vxor.u32 %v1240, 2147483648
      %v1245 = vxor.u32 %v1241, 2147483648
      %v1246 = vxor.u32 %v1242, 2147483648
      %v1247 = vmul.f32 %v1243, 1.442695
      %v1248 = vpow.pop %v1247
      %v1249 = vmul.f32 %v1244, 1.442695
      %v1250 = vpow.pop %v1249
      %v1251 = vmul.f32 %v1245, 1.442695
      %v1252 = vpow.pop %v1251
      %v1253 = vmul.f32 %v1246, 1.442695
      %v1254 = vpow.pop %v1253
      %v1255 = vadd.f32 %v1248, 1.0
      %v1256 = vadd.f32 %v1250, 1.0
      %v1257 = vadd.f32 %v1252, 1.0
      %v1258 = vadd.f32 %v1254, 1.0
      %v1259 = vrcp.pop %v1255
      %v1260 = vmul.f32 1.0, %v1259
      %v1261 = vrcp.pop %v1256
      %v1262 = vmul.f32 1.0, %v1261
      %v1263 = vrcp.pop %v1257
      %v1264 = vmul.f32 1.0, %v1263
      %v1265 = vrcp.pop %v1258
      %v1266 = vmul.f32 1.0, %v1265
      %v1271 = vcombine.low %v1260, %v1262
      %v1272 = vcombine.low %v1264, %v1266
      %v1274 = vunpack.c.l.s4 1966171168
      %v1275 = vunpack.c.0.s8 %v1274
      %v1276 = vlaneseq
      %v1277 = vshrl.u32 %v1276, 7
      %v1278 = vsub.s32 %v1275, %v1277
      %v1279 = vrot.slane %v1271, %v1278
      %v1281 = vunpack.c.l.s4 1966171168
      %v1282 = vunpack.c.0.s8 %v1281
      %v1283 = vlaneseq
      %v1284 = vshrl.u32 %v1283, 7
      %v1285 = vsub.s32 %v1282, %v1284
      %v1286 = vrot.slane %v1272, %v1285
      %v1287 = vcombine.low %v1279, %v1286
      %v1289 = vunpack.c.l.s4 1966171168
      %v1290 = vunpack.c.0.s8 %v1289
      %v1291 = vlaneseq
      %v1292 = vshrl.u32 %v1291, 7
      %v1293 = vsub.s32 %v1290, %v1292
      %v1294 = vrot.slane %v1287, %v1293
      %v1296 = vlaneseq
      %vm1297 = vcmp.ge.s32.totalorder %v1296, 0
      %vm1298 = vcmp.lt.s32.totalorder %v1296, 512
      %vm1299 = vmand %vm1297, %vm1298
      %1300 = vst.msk [vmem:[%s213] sm:$0xf] %vm1299, %v1294
      %s1301 = smul.u32 4, %s15
      %p1302 = scmp.lt.s32.totalorder %s1301, 7
      %s1303 = scalar_select %p1302, %s1301, 7
      %s1304 = scalar_lea.vmem %s4, %s1303
      // Predicated region
      $region37: #{forward.1} parent=35 // pred_check
        %p1305 = pneg %p127
      $region38: #{forward.1} parent=35 // pred_check_branch
        %1307 = sbr.rel (%p1305) target = $region40
      $region39: #{forward.1} parent=35 // pred_region
        %s1308 = smul.u32 4, %s15
      $region40: #{forward.1} parent=35 // pred_fallthru
        _
    $region36: #{forward.1} parent=5 // pred_fallthru
      _
    %p1309 = scmp.le.s32.totalorder 2, %s10
    // Predicated region
    $region41: #{forward.1} parent=5 // pred_check
      %p1310 = pneg %p1309
    $region42: #{forward.1} parent=5 // pred_check_branch
      %1312 = sbr.rel (%p1310) target = $region44
    $region43: #{forward.1} parent=5 // pred_region
      %s1313 = ssub.s32 %s10, 2
      // Predicated region
      $region45: #{forward.1} parent=43 // pred_check
        %p1314 = pneg %p133
      $region46: #{forward.1} parent=43 // pred_check_branch
        %1316 = sbr.rel (%p1314) target = $region48
      $region47: #{forward.1} parent=43 // pred_region
        %s1317 = smul.u32 4, %s16
        %p1318 = scmp.lt.s32.totalorder %s1317, 7
        %s1319 = scalar_select %p1318, %s1317, 7
        %s1320 = scalar_lea.vmem %s4, %s1319
      $region48: #{forward.1} parent=43 // pred_fallthru
        _
    $region44: #{forward.1} parent=5 // pred_fallthru
      _
  $region6: #{forward.1} parent=0 // loop_footer
    %s14 = sadd.s32 1, %s10
  $region7: #{forward.1} parent=0 // loop_footer_branch
    %9 = sbr.rel target = $region3
  $region8: #{forward.1} parent=0 // loop_exit
    _

</llo_original>
